<compile_context>
chip_gen: v6e
topology: v6e:2x2x1
jax: 0.10.0
libtpu: 0.0.40
codegen_flags: <defaults>
</compile_context>

<pallas_src>
import functools

import jax
import jax.numpy as jnp
from jax import lax
from jax.experimental import pallas as pl
from jax.experimental.pallas import tpu as pltpu


# -----------------------------------------------------------------------------
# Kernel 1a: per-layer prologue — per-head projection + attention scalars.
# -----------------------------------------------------------------------------
def _gat_proj_kernel(x_ref, w_ref, att_src_ref, att_dst_ref,
                     h_out, a_src_out, a_dst_out, *, heads):
    # x_ref:       [N, Fin] f32        w_ref: [H, Fin, D] f32
    # att_src_ref: [H, D] f32          att_dst_ref: [H, D] f32
    # h_out:       [H, N, D] bf16      a_src_out: [H, 1, N] f32
    # a_dst_out:   [H, N, 1] f32
    xb = x_ref[...].astype(jnp.bfloat16)
    for hh in range(heads):                                   # heads <= 4, static
        wb = w_ref[hh].astype(jnp.bfloat16)                   # [Fin, D]
        hf = jnp.dot(xb, wb, preferred_element_type=jnp.float32)   # [N, D] f32
        att_s = att_src_ref[hh:hh + 1, :]                     # [1, D]
        att_d = att_dst_ref[hh:hh + 1, :]                     # [1, D]
        # Source-side term as a lane-aligned row: att_s . hf^T -> [1, N]
        a_src_out[hh] = lax.dot_general(
            att_s, hf, (((1,), (1,)), ((), ())),
            preferred_element_type=jnp.float32)
        # Destination-side term as a column: sum_d hf * att_d -> [N, 1]
        a_dst_out[hh] = jnp.sum(hf * att_d, axis=-1, keepdims=True)
        h_out[hh] = hf.astype(jnp.bfloat16)


# -----------------------------------------------------------------------------
# Kernel 1b: gridded masked-softmax attention + bias + BatchNorm(eval) + ELU.
# One grid step handles one (destination-row tile, head) pair.
# -----------------------------------------------------------------------------
def _gat_attn_kernel(adj_ref, h_ref, a_src_ref, a_dst_ref,
                     bias_ref, scale_ref, shift_ref, out_ref):
    # adj_ref:   [tm, N] bf16  (adj[dst, src] = 1 on edges, self-loops included)
    # h_ref:     [N, D]  bf16  projected features of this head (all sources)
    # a_src_ref: [1, N] f32    a_dst_ref: [tm, 1] f32
    # bias/scale/shift: [1, D] f32      out_ref: [tm, D] f32
    neg = jnp.float32(-1e30)
    e = a_dst_ref[...] + a_src_ref[...]                    # [tm, N]
    e = jnp.where(e > 0, e, 0.2 * e)                       # LeakyReLU(0.2)
    e = jnp.where(adj_ref[...] > 0, e, neg)                # mask non-edges
    m = jnp.max(e, axis=-1, keepdims=True)                 # rows have self-loops
    p = jnp.exp(e - m)                                     # softmax in f32
    denom = jnp.sum(p, axis=-1, keepdims=True)
    alpha = p * pl.reciprocal(denom, approx=True)          # EUP, off the VALU path
    o = jnp.dot(alpha.astype(jnp.bfloat16), h_ref[...],    # bf16 MXU, f32 accum
                preferred_element_type=jnp.float32)        # [tm, D]
    o = o + bias_ref[...]                                  # GATConv bias
    o = o * scale_ref[...] + shift_ref[...]                # BatchNorm1d (eval)
    out_ref[...] = jnp.where(o > 0, o, jnp.exp(o) - 1.0)   # ELU


def _pick_row_tile(n):
    # Largest tile from a conservative candidate set that divides N.  Capped
    # at 256 rows so a double-buffered (tm, N) bf16 adj tile stays well inside
    # the scoped-VMEM limit on every generation (v7x: 64 MiB physical).
    for t in (256, 128, 64, 32, 16):
        if n % t == 0:
            return t
    return n   # single tile; block == full array dims


def gat_layer(x, adj_bf16, p, *, heads, out_dim):
    """One GATConv + BatchNorm1d(eval) + ELU layer.  Returns [heads, N, D]."""
    n = x.shape[0]
    vmem = pl.BlockSpec(memory_space=pltpu.MemorySpace.VMEM)

    # --- prologue (un-gridded, small) ---
    h3, a_src, a_dst = pl.pallas_call(
        functools.partial(_gat_proj_kernel, heads=heads),
        out_shape=(
            jax.ShapeDtypeStruct((heads, n, out_dim), jnp.bfloat16),
            jax.ShapeDtypeStruct((heads, 1, n), jnp.float32),
            jax.ShapeDtypeStruct((heads, n, 1), jnp.float32),
        ),
        in_specs=[vmem] * 4,
        out_specs=(vmem, vmem, vmem),
    )(x, p["w3"], p["att_src"], p["att_dst"])

    # --- main attention kernel: grid over (dst-row tiles, heads) ---
    tm = _pick_row_tile(n)
    grid = (n // tm, heads)
    flops = 2 * heads * n * n * out_dim
    bytes_accessed = (2 * n * n                                 # adj (bf16)
                      + 2 * heads * (n // tm) * n * out_dim     # h3 re-reads
                      + 4 * heads * n * out_dim                 # output
                      + 8 * heads * n)                          # attn scalars
    out3 = pl.pallas_call(
        _gat_attn_kernel,
        out_shape=jax.ShapeDtypeStruct((heads, n, out_dim), jnp.float32),
        grid=grid,
        in_specs=[
            pl.BlockSpec((tm, n), lambda i, h: (i, 0)),                 # adj
            pl.BlockSpec((None, n, out_dim), lambda i, h: (h, 0, 0)),   # h3
            pl.BlockSpec((None, 1, n), lambda i, h: (h, 0, 0)),         # a_src
            pl.BlockSpec((None, tm, 1), lambda i, h: (h, i, 0)),        # a_dst
            pl.BlockSpec((None, 1, out_dim), lambda i, h: (h, 0, 0)),   # bias
            pl.BlockSpec((None, 1, out_dim), lambda i, h: (h, 0, 0)),   # bn scale
            pl.BlockSpec((None, 1, out_dim), lambda i, h: (h, 0, 0)),   # bn shift
        ],
        out_specs=pl.BlockSpec((None, tm, out_dim), lambda i, h: (h, i, 0)),
        compiler_params=pltpu.CompilerParams(
            # Row-tile axis -> megacore "parallel" (2 TCs on v7x); head axis is
            # the inner "arbitrary" axis so the adj tile is not re-DMA'd per head.
            dimension_semantics=("parallel", "arbitrary"),
            vmem_limit_bytes=32 * 1024 * 1024,
        ),
        cost_estimate=pl.CostEstimate(
            flops=int(flops),
            transcendentals=int(heads * n * n),
            bytes_accessed=int(bytes_accessed),
        ),
    )(adj_bf16, h3, a_src, a_dst, p["bias"], p["bn_scale"], p["bn_shift"])
    return out3


# -----------------------------------------------------------------------------
# Kernel 2: global_mean_pool + fc1 + ELU + fc2, fused (tiny; single call).
# -----------------------------------------------------------------------------
def _pool_fc_kernel(x_ref, pool_ref, w1_ref, b1_ref, w2_ref, b2_ref, out_ref):
    pooled = jnp.dot(pool_ref[...], x_ref[...],
                     preferred_element_type=jnp.float32)              # [G, D]
    h1 = jnp.dot(pooled, w1_ref[...],
                 preferred_element_type=jnp.float32) + b1_ref[...]    # [G, D]
    h1 = jnp.where(h1 > 0, h1, jnp.exp(h1) - 1.0)                     # ELU
    out_ref[...] = jnp.dot(h1, w2_ref[...],
                           preferred_element_type=jnp.float32) + b2_ref[...]


def pool_fc(x, pool_mat, p):
    g = pool_mat.shape[0]
    num_classes = p["w2"].shape[1]
    vmem = pl.BlockSpec(memory_space=pltpu.MemorySpace.VMEM)
    return pl.pallas_call(
        _pool_fc_kernel,
        out_shape=jax.ShapeDtypeStruct((g, num_classes), jnp.float32),
        in_specs=[vmem] * 6,
        out_specs=vmem,
    )(x, pool_mat, p["w1"], p["b1"], p["w2"], p["b2"])


# -----------------------------------------------------------------------------
# Full forward with Pallas kernels.
# -----------------------------------------------------------------------------
def gat_model_forward(x, adj_bf16, pool_mat, layer0, layer1, head,
                      hidden_dim, heads):
    n = x.shape[0]
    # TODO(synk): for sparse graphs (avg degree << N) switch to a CSR
    #             neighbor-gather kernel with PrefetchScalarGridSpec; when adj
    #             fits VMEM, fuse both GAT layers into one pallas_call so adj
    #             is read from HBM only once.
    o0 = gat_layer(x, adj_bf16, layer0, heads=heads, out_dim=hidden_dim)  # [H,N,hid]
    x1 = jnp.transpose(o0, (1, 0, 2)).reshape(n, heads * hidden_dim)      # [N,H*hid]
    o1 = gat_layer(x1, adj_bf16, layer1, heads=1, out_dim=hidden_dim)     # [1,N,hid]
    x2 = o1[0]                                                            # [N,hid]
    return pool_fc(x2, pool_mat, head)                                    # [G,C]


# -----------------------------------------------------------------------------
# Parameter construction (deterministic, synthetic) in kernel-friendly layout.
# -----------------------------------------------------------------------------
def _bn_fold(key, heads, channels_per_head, eps=1e-5):
    k1, k2, k3, k4 = jax.random.split(key, 4)
    shape = (heads, 1, channels_per_head)
    gamma = 1.0 + 0.1 * jax.random.normal(k1, shape, jnp.float32)
    beta = 0.1 * jax.random.normal(k2, shape, jnp.float32)
    run_mean = 0.1 * jax.random.normal(k3, shape, jnp.float32)
    run_var = 1.0 + 0.1 * jnp.abs(jax.random.normal(k4, shape, jnp.float32))
    scale = gamma / jnp.sqrt(run_var + eps)
    shift = beta - run_mean * scale
    return scale, shift


def _gat_params(key, in_dim, out_dim, heads):
    k1, k2, k3, k4 = jax.random.split(key, 4)
    s = 1.0 / jnp.sqrt(jnp.float32(in_dim))
    return {
        "w3": s * jax.random.normal(k1, (heads, in_dim, out_dim), jnp.float32),
        "att_src": 0.2 * jax.random.normal(k2, (heads, out_dim), jnp.float32),
        "att_dst": 0.2 * jax.random.normal(k3, (heads, out_dim), jnp.float32),
        "bias": 0.05 * jax.random.normal(k4, (heads, 1, out_dim), jnp.float32),
    }


def init_model(key, input_dim, hidden_dim, num_classes, heads):
    keys = jax.random.split(key, 8)
    layer0 = _gat_params(keys[0], input_dim, hidden_dim, heads)
    layer0["bn_scale"], layer0["bn_shift"] = _bn_fold(keys[1], heads, hidden_dim)
    layer1 = _gat_params(keys[2], hidden_dim * heads, hidden_dim, 1)
    layer1["bn_scale"], layer1["bn_shift"] = _bn_fold(keys[3], 1, hidden_dim)
    head = {
        "w1": (1.0 / jnp.sqrt(jnp.float32(hidden_dim)))
              * jax.random.normal(keys[4], (hidden_dim, hidden_dim), jnp.float32),
        "b1": 0.05 * jax.random.normal(keys[5], (1, hidden_dim), jnp.float32),
        "w2": (1.0 / jnp.sqrt(jnp.float32(hidden_dim)))
              * jax.random.normal(keys[6], (hidden_dim, num_classes), jnp.float32),
        "b2": 0.05 * jax.random.normal(keys[7], (1, num_classes), jnp.float32),
    }
    return layer0, layer1, head


# -----------------------------------------------------------------------------
# Pure-JAX reference (mirrors the kernel's bf16 matmul precision) for checking.
# -----------------------------------------------------------------------------
def _gat_layer_ref(x, adj, p, heads, out_dim):
    xb = x.astype(jnp.bfloat16)
    outs = []
    for hh in range(heads):
        hf = jnp.dot(xb, p["w3"][hh].astype(jnp.bfloat16),
                     preferred_element_type=jnp.float32)              # [N, D]
        a_s = jnp.sum(hf * p["att_src"][hh][None, :], -1, keepdims=True)
        a_d = jnp.sum(hf * p["att_dst"][hh][None, :], -1, keepdims=True)
        e = a_d + a_s.T
        e = jnp.where(e > 0, e, 0.2 * e)
        e = jnp.where(adj > 0, e, -1e30)
        e = e - jnp.max(e, -1, keepdims=True)
        alpha = jnp.exp(e) / jnp.sum(jnp.exp(e), -1, keepdims=True)
        o = jnp.dot(alpha.astype(jnp.bfloat16), hf.astype(jnp.bfloat16),
                    preferred_element_type=jnp.float32)
        o = o + p["bias"][hh]
        o = o * p["bn_scale"][hh] + p["bn_shift"][hh]
        outs.append(jnp.where(o > 0, o, jnp.exp(o) - 1.0))
    return jnp.concatenate(outs, axis=-1) if heads > 1 else outs[0]


def _model_ref(x, adj, pool_mat, layer0, layer1, head, hidden_dim, heads):
    x = _gat_layer_ref(x, adj, layer0, heads, hidden_dim)
    x = _gat_layer_ref(x, adj, layer1, 1, hidden_dim)
    pooled = pool_mat @ x
    h1 = pooled @ head["w1"] + head["b1"]
    h1 = jnp.where(h1 > 0, h1, jnp.exp(h1) - 1.0)
    return h1 @ head["w2"] + head["b2"]


if __name__ == "__main__":
    # Small, deterministic problem: 2 graphs of 8 nodes each.
    N, G = 16, 2
    input_dim, hidden_dim, num_classes, heads = 8, 8, 3, 4

    key = jax.random.PRNGKey(0)
    kx, kp = jax.random.split(key)
    x = jax.random.normal(kx, (N, input_dim), jnp.float32)

    # batch assignment and edges: a bidirectional ring inside each graph.
    batch = jnp.array([0] * 8 + [1] * 8, jnp.int32)
    src, dst = [], []
    for g in range(G):
        base = g * 8
        for i in range(8):
            a, b = base + i, base + (i + 1) % 8
            src += [a, b]
            dst += [b, a]
    edge_index = jnp.array([src, dst], jnp.int32)                      # [2, E]

    # Dense adjacency mask adj[dst, src] = 1, plus self-loops (which also
    # guarantee every softmax row has at least one valid entry -> no NaN).
    adj = jnp.zeros((N, N), jnp.float32)
    adj = adj.at[edge_index[1], edge_index[0]].set(1.0)
    adj = adj.at[jnp.arange(N), jnp.arange(N)].set(1.0)
    adj_bf16 = adj.astype(jnp.bfloat16)     # halves adj HBM/VMEM bytes

    # Mean-pool matrix [G, N].
    onehot = (batch[None, :] == jnp.arange(G)[:, None]).astype(jnp.float32)
    pool_mat = onehot / jnp.sum(onehot, axis=1, keepdims=True)

    layer0, layer1, head = init_model(kp, input_dim, hidden_dim, num_classes,
                                      heads)

    out = gat_model_forward(x, adj_bf16, pool_mat, layer0, layer1, head,
                            hidden_dim, heads)
    out = jax.block_until_ready(out)

    ref = _model_ref(x, adj, pool_mat, layer0, layer1, head, hidden_dim, heads)
    assert out.shape == (G, num_classes)
    assert jnp.allclose(out, ref, rtol=2e-2, atol=2e-2), (out, ref)

    print("KERNEL_OK")
</pallas_src>

<mosaic_0001>
module attributes {stable_mosaic.version = 11 : i64} {
  func.func @_gat_proj_kernel(%arg0: memref<16x8xf32, #tpu.memory_space<vmem>>, %arg1: memref<4x8x8xf32, #tpu.memory_space<vmem>>, %arg2: memref<4x8xf32, #tpu.memory_space<vmem>>, %arg3: memref<4x8xf32, #tpu.memory_space<vmem>>, %arg4: memref<4x16x8xbf16, #tpu.memory_space<vmem>>, %arg5: memref<4x1x16xf32, #tpu.memory_space<vmem>>, %arg6: memref<4x16x1xf32, #tpu.memory_space<vmem>>) attributes {dimension_semantics = [], scalar_prefetch = 0 : i64, scratch_operands = 0 : i64, tpu.core_type = #tpu.core_type<tc>} {
    %c0 = arith.constant 0 : index
    %c0_0 = arith.constant 0 : index
    %0 = vector.load %arg0[%c0, %c0_0] : memref<16x8xf32, #tpu.memory_space<vmem>>, vector<16x8xf32>
    %1 = arith.truncf %0 : vector<16x8xf32> to vector<16x8xbf16>
    %c0_1 = arith.constant 0 : index
    %c0_2 = arith.constant 0 : index
    %c0_3 = arith.constant 0 : index
    %2 = vector.load %arg1[%c0_1, %c0_2, %c0_3] : memref<4x8x8xf32, #tpu.memory_space<vmem>>, vector<1x8x8xf32>
    %3 = vector.shape_cast %2 : vector<1x8x8xf32> to vector<8x8xf32>
    %4 = arith.truncf %3 : vector<8x8xf32> to vector<8x8xbf16>
    %cst = arith.constant dense<0.000000e+00> : vector<16x8xf32>
    %5 = tpu.matmul %1, %4, %cst {dimension_numbers = #tpu.dot_dimension_numbers<[1], [0], [0], [1], [0, 0, 1, 1], [], []>} : vector<16x8xbf16>, vector<8x8xbf16>, vector<16x8xf32> -> vector<16x8xf32>
    %c0_4 = arith.constant 0 : index
    %c0_5 = arith.constant 0 : index
    %6 = vector.load %arg2[%c0_4, %c0_5] : memref<4x8xf32, #tpu.memory_space<vmem>>, vector<1x8xf32>
    %c0_6 = arith.constant 0 : index
    %c0_7 = arith.constant 0 : index
    %7 = vector.load %arg3[%c0_6, %c0_7] : memref<4x8xf32, #tpu.memory_space<vmem>>, vector<1x8xf32>
    %cst_8 = arith.constant dense<0.000000e+00> : vector<1x16xf32>
    %8 = tpu.matmul %6, %5, %cst_8 {dimension_numbers = #tpu.dot_dimension_numbers<[1], [1], [0], [0], [0, 0, 1, 0], [], []>} : vector<1x8xf32>, vector<16x8xf32>, vector<1x16xf32> -> vector<1x16xf32>
    %c0_9 = arith.constant 0 : index
    %c0_10 = arith.constant 0 : index
    %c0_11 = arith.constant 0 : index
    %9 = vector.load %arg5[%c0_9, %c0_10, %c0_11] : memref<4x1x16xf32, #tpu.memory_space<vmem>>, vector<1x1x16xf32>
    %10 = vector.shape_cast %9 : vector<1x1x16xf32> to vector<1x16xf32>
    %11 = vector.shape_cast %8 : vector<1x16xf32> to vector<1x1x16xf32>
    tpu.vector_store %arg5[%c0_9, %c0_10, %c0_11], %11 {strides = array<i32>} : memref<4x1x16xf32, #tpu.memory_space<vmem>>, vector<1x1x16xf32>,
    %12 = vector.broadcast %7 : vector<1x8xf32> to vector<16x8xf32>
    %13 = arith.mulf %5, %12 : vector<16x8xf32>
    %cst_12 = arith.constant dense<0.000000e+00> : vector<16xf32>
    %14 = vector.multi_reduction <add>, %13, %cst_12 [1] : vector<16x8xf32> to vector<16xf32>
    %15 = vector.shape_cast %14 : vector<16xf32> to vector<16x1xf32>
    %c0_13 = arith.constant 0 : index
    %c0_14 = arith.constant 0 : index
    %c0_15 = arith.constant 0 : index
    %16 = vector.load %arg6[%c0_13, %c0_14, %c0_15] : memref<4x16x1xf32, #tpu.memory_space<vmem>>, vector<1x16x1xf32>
    %17 = vector.shape_cast %16 : vector<1x16x1xf32> to vector<16x1xf32>
    %18 = vector.shape_cast %15 : vector<16x1xf32> to vector<1x16x1xf32>
    tpu.vector_store %arg6[%c0_13, %c0_14, %c0_15], %18 {strides = array<i32>} : memref<4x16x1xf32, #tpu.memory_space<vmem>>, vector<1x16x1xf32>,
    %19 = arith.truncf %5 : vector<16x8xf32> to vector<16x8xbf16>
    %c0_16 = arith.constant 0 : index
    %c0_17 = arith.constant 0 : index
    %c0_18 = arith.constant 0 : index
    %20 = vector.load %arg4[%c0_16, %c0_17, %c0_18] : memref<4x16x8xbf16, #tpu.memory_space<vmem>>, vector<1x16x8xbf16>
    %21 = vector.shape_cast %20 : vector<1x16x8xbf16> to vector<16x8xbf16>
    %22 = vector.shape_cast %19 : vector<16x8xbf16> to vector<1x16x8xbf16>
    tpu.vector_store %arg4[%c0_16, %c0_17, %c0_18], %22 {strides = array<i32>} : memref<4x16x8xbf16, #tpu.memory_space<vmem>>, vector<1x16x8xbf16>,
    %c1 = arith.constant 1 : index
    %c0_19 = arith.constant 0 : index
    %c0_20 = arith.constant 0 : index
    %23 = vector.load %arg1[%c1, %c0_19, %c0_20] : memref<4x8x8xf32, #tpu.memory_space<vmem>>, vector<1x8x8xf32>
    %24 = vector.shape_cast %23 : vector<1x8x8xf32> to vector<8x8xf32>
    %25 = arith.truncf %24 : vector<8x8xf32> to vector<8x8xbf16>
    %cst_21 = arith.constant dense<0.000000e+00> : vector<16x8xf32>
    %26 = tpu.matmul %1, %25, %cst_21 {dimension_numbers = #tpu.dot_dimension_numbers<[1], [0], [0], [1], [0, 0, 1, 1], [], []>} : vector<16x8xbf16>, vector<8x8xbf16>, vector<16x8xf32> -> vector<16x8xf32>
    %c1_22 = arith.constant 1 : index
    %c0_23 = arith.constant 0 : index
    %27 = vector.load %arg2[%c1_22, %c0_23] : memref<4x8xf32, #tpu.memory_space<vmem>>, vector<1x8xf32>
    %c1_24 = arith.constant 1 : index
    %c0_25 = arith.constant 0 : index
    %28 = vector.load %arg3[%c1_24, %c0_25] : memref<4x8xf32, #tpu.memory_space<vmem>>, vector<1x8xf32>
    %cst_26 = arith.constant dense<0.000000e+00> : vector<1x16xf32>
    %29 = tpu.matmul %27, %26, %cst_26 {dimension_numbers = #tpu.dot_dimension_numbers<[1], [1], [0], [0], [0, 0, 1, 0], [], []>} : vector<1x8xf32>, vector<16x8xf32>, vector<1x16xf32> -> vector<1x16xf32>
    %c1_27 = arith.constant 1 : index
    %c0_28 = arith.constant 0 : index
    %c0_29 = arith.constant 0 : index
    %30 = vector.load %arg5[%c1_27, %c0_28, %c0_29] : memref<4x1x16xf32, #tpu.memory_space<vmem>>, vector<1x1x16xf32>
    %31 = vector.shape_cast %30 : vector<1x1x16xf32> to vector<1x16xf32>
    %32 = vector.shape_cast %29 : vector<1x16xf32> to vector<1x1x16xf32>
    tpu.vector_store %arg5[%c1_27, %c0_28, %c0_29], %32 {strides = array<i32>} : memref<4x1x16xf32, #tpu.memory_space<vmem>>, vector<1x1x16xf32>,
    %33 = vector.broadcast %28 : vector<1x8xf32> to vector<16x8xf32>
    %34 = arith.mulf %26, %33 : vector<16x8xf32>
    %cst_30 = arith.constant dense<0.000000e+00> : vector<16xf32>
    %35 = vector.multi_reduction <add>, %34, %cst_30 [1] : vector<16x8xf32> to vector<16xf32>
    %36 = vector.shape_cast %35 : vector<16xf32> to vector<16x1xf32>
    %c1_31 = arith.constant 1 : index
    %c0_32 = arith.constant 0 : index
    %c0_33 = arith.constant 0 : index
    %37 = vector.load %arg6[%c1_31, %c0_32, %c0_33] : memref<4x16x1xf32, #tpu.memory_space<vmem>>, vector<1x16x1xf32>
    %38 = vector.shape_cast %37 : vector<1x16x1xf32> to vector<16x1xf32>
    %39 = vector.shape_cast %36 : vector<16x1xf32> to vector<1x16x1xf32>
    tpu.vector_store %arg6[%c1_31, %c0_32, %c0_33], %39 {strides = array<i32>} : memref<4x16x1xf32, #tpu.memory_space<vmem>>, vector<1x16x1xf32>,
    %40 = arith.truncf %26 : vector<16x8xf32> to vector<16x8xbf16>
    %c1_34 = arith.constant 1 : index
    %c0_35 = arith.constant 0 : index
    %c0_36 = arith.constant 0 : index
    %41 = vector.load %arg4[%c1_34, %c0_35, %c0_36] : memref<4x16x8xbf16, #tpu.memory_space<vmem>>, vector<1x16x8xbf16>
    %42 = vector.shape_cast %41 : vector<1x16x8xbf16> to vector<16x8xbf16>
    %43 = vector.shape_cast %40 : vector<16x8xbf16> to vector<1x16x8xbf16>
    tpu.vector_store %arg4[%c1_34, %c0_35, %c0_36], %43 {strides = array<i32>} : memref<4x16x8xbf16, #tpu.memory_space<vmem>>, vector<1x16x8xbf16>,
    %c2 = arith.constant 2 : index
    %c0_37 = arith.constant 0 : index
    %c0_38 = arith.constant 0 : index
    %44 = vector.load %arg1[%c2, %c0_37, %c0_38] : memref<4x8x8xf32, #tpu.memory_space<vmem>>, vector<1x8x8xf32>
    %45 = vector.shape_cast %44 : vector<1x8x8xf32> to vector<8x8xf32>
    %46 = arith.truncf %45 : vector<8x8xf32> to vector<8x8xbf16>
    %cst_39 = arith.constant dense<0.000000e+00> : vector<16x8xf32>
    %47 = tpu.matmul %1, %46, %cst_39 {dimension_numbers = #tpu.dot_dimension_numbers<[1], [0], [0], [1], [0, 0, 1, 1], [], []>} : vector<16x8xbf16>, vector<8x8xbf16>, vector<16x8xf32> -> vector<16x8xf32>
    %c2_40 = arith.constant 2 : index
    %c0_41 = arith.constant 0 : index
    %48 = vector.load %arg2[%c2_40, %c0_41] : memref<4x8xf32, #tpu.memory_space<vmem>>, vector<1x8xf32>
    %c2_42 = arith.constant 2 : index
    %c0_43 = arith.constant 0 : index
    %49 = vector.load %arg3[%c2_42, %c0_43] : memref<4x8xf32, #tpu.memory_space<vmem>>, vector<1x8xf32>
    %cst_44 = arith.constant dense<0.000000e+00> : vector<1x16xf32>
    %50 = tpu.matmul %48, %47, %cst_44 {dimension_numbers = #tpu.dot_dimension_numbers<[1], [1], [0], [0], [0, 0, 1, 0], [], []>} : vector<1x8xf32>, vector<16x8xf32>, vector<1x16xf32> -> vector<1x16xf32>
    %c2_45 = arith.constant 2 : index
    %c0_46 = arith.constant 0 : index
    %c0_47 = arith.constant 0 : index
    %51 = vector.load %arg5[%c2_45, %c0_46, %c0_47] : memref<4x1x16xf32, #tpu.memory_space<vmem>>, vector<1x1x16xf32>
    %52 = vector.shape_cast %51 : vector<1x1x16xf32> to vector<1x16xf32>
    %53 = vector.shape_cast %50 : vector<1x16xf32> to vector<1x1x16xf32>
    tpu.vector_store %arg5[%c2_45, %c0_46, %c0_47], %53 {strides = array<i32>} : memref<4x1x16xf32, #tpu.memory_space<vmem>>, vector<1x1x16xf32>,
    %54 = vector.broadcast %49 : vector<1x8xf32> to vector<16x8xf32>
    %55 = arith.mulf %47, %54 : vector<16x8xf32>
    %cst_48 = arith.constant dense<0.000000e+00> : vector<16xf32>
    %56 = vector.multi_reduction <add>, %55, %cst_48 [1] : vector<16x8xf32> to vector<16xf32>
    %57 = vector.shape_cast %56 : vector<16xf32> to vector<16x1xf32>
    %c2_49 = arith.constant 2 : index
    %c0_50 = arith.constant 0 : index
    %c0_51 = arith.constant 0 : index
    %58 = vector.load %arg6[%c2_49, %c0_50, %c0_51] : memref<4x16x1xf32, #tpu.memory_space<vmem>>, vector<1x16x1xf32>
    %59 = vector.shape_cast %58 : vector<1x16x1xf32> to vector<16x1xf32>
    %60 = vector.shape_cast %57 : vector<16x1xf32> to vector<1x16x1xf32>
    tpu.vector_store %arg6[%c2_49, %c0_50, %c0_51], %60 {strides = array<i32>} : memref<4x16x1xf32, #tpu.memory_space<vmem>>, vector<1x16x1xf32>,
    %61 = arith.truncf %47 : vector<16x8xf32> to vector<16x8xbf16>
    %c2_52 = arith.constant 2 : index
    %c0_53 = arith.constant 0 : index
    %c0_54 = arith.constant 0 : index
    %62 = vector.load %arg4[%c2_52, %c0_53, %c0_54] : memref<4x16x8xbf16, #tpu.memory_space<vmem>>, vector<1x16x8xbf16>
    %63 = vector.shape_cast %62 : vector<1x16x8xbf16> to vector<16x8xbf16>
    %64 = vector.shape_cast %61 : vector<16x8xbf16> to vector<1x16x8xbf16>
    tpu.vector_store %arg4[%c2_52, %c0_53, %c0_54], %64 {strides = array<i32>} : memref<4x16x8xbf16, #tpu.memory_space<vmem>>, vector<1x16x8xbf16>,
    %c3 = arith.constant 3 : index
    %c0_55 = arith.constant 0 : index
    %c0_56 = arith.constant 0 : index
    %65 = vector.load %arg1[%c3, %c0_55, %c0_56] : memref<4x8x8xf32, #tpu.memory_space<vmem>>, vector<1x8x8xf32>
    %66 = vector.shape_cast %65 : vector<1x8x8xf32> to vector<8x8xf32>
    %67 = arith.truncf %66 : vector<8x8xf32> to vector<8x8xbf16>
    %cst_57 = arith.constant dense<0.000000e+00> : vector<16x8xf32>
    %68 = tpu.matmul %1, %67, %cst_57 {dimension_numbers = #tpu.dot_dimension_numbers<[1], [0], [0], [1], [0, 0, 1, 1], [], []>} : vector<16x8xbf16>, vector<8x8xbf16>, vector<16x8xf32> -> vector<16x8xf32>
    %c3_58 = arith.constant 3 : index
    %c0_59 = arith.constant 0 : index
    %69 = vector.load %arg2[%c3_58, %c0_59] : memref<4x8xf32, #tpu.memory_space<vmem>>, vector<1x8xf32>
    %c3_60 = arith.constant 3 : index
    %c0_61 = arith.constant 0 : index
    %70 = vector.load %arg3[%c3_60, %c0_61] : memref<4x8xf32, #tpu.memory_space<vmem>>, vector<1x8xf32>
    %cst_62 = arith.constant dense<0.000000e+00> : vector<1x16xf32>
    %71 = tpu.matmul %69, %68, %cst_62 {dimension_numbers = #tpu.dot_dimension_numbers<[1], [1], [0], [0], [0, 0, 1, 0], [], []>} : vector<1x8xf32>, vector<16x8xf32>, vector<1x16xf32> -> vector<1x16xf32>
    %c3_63 = arith.constant 3 : index
    %c0_64 = arith.constant 0 : index
    %c0_65 = arith.constant 0 : index
    %72 = vector.load %arg5[%c3_63, %c0_64, %c0_65] : memref<4x1x16xf32, #tpu.memory_space<vmem>>, vector<1x1x16xf32>
    %73 = vector.shape_cast %72 : vector<1x1x16xf32> to vector<1x16xf32>
    %74 = vector.shape_cast %71 : vector<1x16xf32> to vector<1x1x16xf32>
    tpu.vector_store %arg5[%c3_63, %c0_64, %c0_65], %74 {strides = array<i32>} : memref<4x1x16xf32, #tpu.memory_space<vmem>>, vector<1x1x16xf32>,
    %75 = vector.broadcast %70 : vector<1x8xf32> to vector<16x8xf32>
    %76 = arith.mulf %68, %75 : vector<16x8xf32>
    %cst_66 = arith.constant dense<0.000000e+00> : vector<16xf32>
    %77 = vector.multi_reduction <add>, %76, %cst_66 [1] : vector<16x8xf32> to vector<16xf32>
    %78 = vector.shape_cast %77 : vector<16xf32> to vector<16x1xf32>
    %c3_67 = arith.constant 3 : index
    %c0_68 = arith.constant 0 : index
    %c0_69 = arith.constant 0 : index
    %79 = vector.load %arg6[%c3_67, %c0_68, %c0_69] : memref<4x16x1xf32, #tpu.memory_space<vmem>>, vector<1x16x1xf32>
    %80 = vector.shape_cast %79 : vector<1x16x1xf32> to vector<16x1xf32>
    %81 = vector.shape_cast %78 : vector<16x1xf32> to vector<1x16x1xf32>
    tpu.vector_store %arg6[%c3_67, %c0_68, %c0_69], %81 {strides = array<i32>} : memref<4x16x1xf32, #tpu.memory_space<vmem>>, vector<1x16x1xf32>,
    %82 = arith.truncf %68 : vector<16x8xf32> to vector<16x8xbf16>
    %c3_70 = arith.constant 3 : index
    %c0_71 = arith.constant 0 : index
    %c0_72 = arith.constant 0 : index
    %83 = vector.load %arg4[%c3_70, %c0_71, %c0_72] : memref<4x16x8xbf16, #tpu.memory_space<vmem>>, vector<1x16x8xbf16>
    %84 = vector.shape_cast %83 : vector<1x16x8xbf16> to vector<16x8xbf16>
    %85 = vector.shape_cast %82 : vector<16x8xbf16> to vector<1x16x8xbf16>
    tpu.vector_store %arg4[%c3_70, %c0_71, %c0_72], %85 {strides = array<i32>} : memref<4x16x8xbf16, #tpu.memory_space<vmem>>, vector<1x16x8xbf16>,
    return
  }
}

</mosaic_0001>

<llo_original>
// kernel: tpu_custom_call.1
$region0: #{tpu_custom_call.1}
  #allocation0 [shape = 'u32[]', space=smem, size = 0x4, offset = 0x4, fixed_abs, tag = 'smem constant byte address 0x4 - core index']
  #allocation1 [shape = 'u32[144,128]{1,0:T(1,128)}', space=vmem, size = 0x12000, scoped, tag = 'internal scratch']
  %s0 = inlined_call_operand.vmem [shape: f32[16,8], index: 0, kind: input, shape index: {}]
  %s1 = inlined_call_operand.hbm [shape: f32[4,8,8], index: 1, kind: input, shape index: {}]
  %s2 = inlined_call_operand.vmem [shape: f32[4,8], index: 2, kind: input, shape index: {}]
  %s3 = inlined_call_operand.vmem [shape: f32[4,8], index: 3, kind: input, shape index: {}]
  %s4 = inlined_call_operand.vmem [shape: bf16[4,16,8], index: 4, kind: output, shape index: {0}]
  %s5 = inlined_call_operand.hbm [shape: f32[4,1,16], index: 5, kind: output, shape index: {1}]
  %s6 = inlined_call_operand.vmem [shape: f32[4,16,1], index: 6, kind: output, shape index: {2}]
  %7 = xla_tuple %s4, %s5, %s6
  %s8 = sld [smem:[#allocation0]]
  $region46: #{tpu_custom_call.1} parent=0
    _
  %s10 = ssub.s32 1, %s8
  %s11 = scalar_select 0, %s10, %s8
  $region1: #{tpu_custom_call.1} parent=0
    #allocation2 [shape = 'u8[16384]{0}', space=vmem, size = 0x4000, scoped, tag = 'input window, operand 1, single buffered']
    #allocation3 [shape = 's32[1]{0}', space=sflag, size = 0x4, scoped, tag = 'scoped memory for tpu_custom_call.1']
    #allocation4 [shape = 's32[1]{0}', space=sflag, size = 0x4, scoped, tag = 'scoped memory for tpu_custom_call.1']
    #allocation5 [shape = 'u8[2048]{0}', space=vmem, size = 0x800, scoped, tag = 'output window, operand 1, single buffered']
    %12 = vsyncpa [#allocation3], 0
    %13 = vsyncpa [#allocation4], 0
    // Predicated region
    $region2: #{tpu_custom_call.1} parent=1 // pred_check
      _
    $region3: #{tpu_custom_call.1} parent=1 // pred_check_branch
      %15 = sbr.rel (0) target = $region5
    $region4: #{tpu_custom_call.1} parent=1 // pred_region
      _
    $region5: #{tpu_custom_call.1} parent=1 // pred_fallthru
      _
    // Predicated region
    $region6: #{tpu_custom_call.1} parent=1 // pred_check
      _
    $region7: #{tpu_custom_call.1} parent=1 // pred_check_branch
      %17 = sbr.rel (0) target = $region9
    $region8: #{tpu_custom_call.1} parent=1 // pred_region
      %s19 = ssub.s32 512, 512
      %20 = vsyncadd [#allocation3], %s19
      %s21 = sshll.u32 [#allocation2], 4
      %s22 = int_to_ptr.vmem [resolvable:$true] %s21
      %27 = dma.hbm_to_vmem [thread:$0]  %s1, 512, %s22, [#allocation3], 128, 128, 8
    $region9: #{tpu_custom_call.1} parent=1 // pred_fallthru
      _
    // Predicated region
    $region10: #{tpu_custom_call.1} parent=1 // pred_check
      _
    $region11: #{tpu_custom_call.1} parent=1 // pred_check_branch
      %29 = sbr.rel (0) target = $region13
    $region12: #{tpu_custom_call.1} parent=1 // pred_region
      _
    $region13: #{tpu_custom_call.1} parent=1 // pred_fallthru
      _
    // Predicated region
    $region14: #{tpu_custom_call.1} parent=1 // pred_check
      _
    $region15: #{tpu_custom_call.1} parent=1 // pred_check_branch
      %31 = sbr.rel (0) target = $region17
    $region16: #{tpu_custom_call.1} parent=1 // pred_region
      _
    $region17: #{tpu_custom_call.1} parent=1 // pred_fallthru
      _
    // Predicated region
    $region18: #{tpu_custom_call.1} parent=1 // pred_check
      _
    $region19: #{tpu_custom_call.1} parent=1 // pred_check_branch
      %33 = sbr.rel (0) target = $region21
    $region20: #{tpu_custom_call.1} parent=1 // pred_region
      %34 = dma.done [#allocation3], 512
    $region21: #{tpu_custom_call.1} parent=1 // pred_fallthru
      _
    %v36 = vld [vmem:[%s0] sm:$0xff]
    %v37 = vld [vmem:[%s0 + $0x8] sm:$0xff]
    %v38 = vpack.c.bf16 %v37, %v36
    %v39 = vld [vmem:[#allocation2] sm:$0xff]
    %v40 = vpack.c.bf16 %v39, %v39
    %vm41 = vcmask 64512
    %v43 = vsel %vm41, %v38, 0
    %vm45 = vcmask 1043456
    %v47 = vsel %vm45, %v40, 0
    %49 = vmatprep.subr.bf16.mxu0 0
    %50 = vmatpush1.bf16.msra.mxu0 0
    %51 = vmatprep.subr.bf16.mxu0 0
    %52 = vmatpush1.bf16.msra.mxu0 0
    %53 = vmatprep.subr.bf16.mxu0 0
    %54 = vmatpush1.bf16.msra.mxu0 0
    %55 = vmatprep.subr.bf16.mxu0 0
    %56 = vmatpush1.bf16.msra.mxu0 0
    %57 = vmatprep.subr.bf16.mxu0 0
    %58 = vmatpush1.bf16.msra.mxu0 0
    %59 = vmatprep.subr.bf16.mxu0 0
    %60 = vmatpush1.bf16.msra.mxu0 0
    %61 = vmatprep.subr.bf16.mxu0 0
    %62 = vmatpush1.bf16.msra.mxu0 0
    %63 = vmatprep.subr.bf16.mxu0 0
    %64 = vmatpush1.bf16.msra.mxu0 %v47
    %65 = vmatprep.subr.bf16.mxu0 0
    %66 = vmatpush2.bf16.msra.mxu0 0
    %67 = vmatprep.subr.bf16.mxu0 0
    %68 = vmatpush2.bf16.msra.mxu0 0
    %69 = vmatprep.subr.bf16.mxu0 0
    %70 = vmatpush2.bf16.msra.mxu0 0
    %71 = vmatprep.subr.bf16.mxu0 0
    %72 = vmatpush2.bf16.msra.mxu0 0
    %73 = vmatprep.subr.bf16.mxu0 0
    %74 = vmatpush2.bf16.msra.mxu0 0
    %75 = vmatprep.subr.bf16.mxu0 0
    %76 = vmatpush2.bf16.msra.mxu0 0
    %77 = vmatprep.subr.bf16.mxu0 0
    %78 = vmatpush2.bf16.msra.mxu0 0
    %79 = vmatprep.subr.bf16.mxu0 0
    %80 = vmatpush2.bf16.msra.mxu0 0
    %81 = vmatprep.mubr.bf16.mxu0 0
    %82 = vmatmul.mubr.bf16.gmra.mxu0 %v43
    %v83 = vpop.f32.mrf.mxu0
    %v84 = vadd.f32 0.0, %v83
    %v85 = vpop.f32.mrf.mxu0
    %v86 = vpop.f32.mrf.mxu0
    %v87 = vadd.f32 0.0, %v86
    %v88 = vpop.f32.mrf.mxu0
    %89 = vdwg.mxu0
    %v90 = vld [vmem:[%s2] sm:$0x1]
    %v91 = vld [vmem:[%s3] sm:$0x1]
    %v93 = vsel %vm41, %v90, 0
    %v96 = vsel %vm41, %v84, 0
    %v99 = vsel %vm41, %v87, 0
    %101 = vmatprep.subr.mxu0 0.0
    %102 = vmatpush1.xpose.msra.mxu0 0.0
    %103 = vmatprep.subr.mxu0 0.0
    %104 = vmatpush1.xpose.msra.mxu0 0.0
    %105 = vmatprep.subr.mxu0 0.0
    %106 = vmatpush1.xpose.msra.mxu0 0.0
    %107 = vmatprep.subr.mxu0 0.0
    %108 = vmatpush1.xpose.msra.mxu0 0.0
    %109 = vmatprep.subr.mxu0 0.0
    %110 = vmatpush1.xpose.msra.mxu0 0.0
    %111 = vmatprep.subr.mxu0 0.0
    %112 = vmatpush1.xpose.msra.mxu0 0.0
    %113 = vmatprep.subr.mxu0 0.0
    %114 = vmatpush1.xpose.msra.mxu0 0.0
    %115 = vmatprep.subr.mxu0 0.0
    %116 = vmatpush1.xpose.msra.mxu0 0.0
    %117 = vmatprep.subr.mxu0 0.0
    %118 = vmatpush1.xpose.msra.mxu0 0.0
    %119 = vmatprep.subr.mxu0 0.0
    %120 = vmatpush1.xpose.msra.mxu0 0.0
    %121 = vmatprep.subr.mxu0 0.0
    %122 = vmatpush1.xpose.msra.mxu0 0.0
    %123 = vmatprep.subr.mxu0 0.0
    %124 = vmatpush1.xpose.msra.mxu0 0.0
    %125 = vmatprep.subr.mxu0 0.0
    %126 = vmatpush1.xpose.msra.mxu0 0.0
    %127 = vmatprep.subr.mxu0 0.0
    %128 = vmatpush1.xpose.msra.mxu0 0.0
    %129 = vmatprep.subr.mxu0 0.0
    %130 = vmatpush1.xpose.msra.mxu0 %v99
    %131 = vmatprep.subr.mxu0 0.0
    %132 = vmatpush1.xpose.msra.mxu0 %v96
    %133 = vmatprep.subr.mxu0 0.0
    %134 = vmatpush2.xpose.msra.mxu0 0.0
    %135 = vmatprep.subr.mxu0 0.0
    %136 = vmatpush2.xpose.msra.mxu0 0.0
    %137 = vmatprep.subr.mxu0 0.0
    %138 = vmatpush2.xpose.msra.mxu0 0.0
    %139 = vmatprep.subr.mxu0 0.0
    %140 = vmatpush2.xpose.msra.mxu0 0.0
    %141 = vmatprep.subr.mxu0 0.0
    %142 = vmatpush2.xpose.msra.mxu0 0.0
    %143 = vmatprep.subr.mxu0 0.0
    %144 = vmatpush2.xpose.msra.mxu0 0.0
    %145 = vmatprep.subr.mxu0 0.0
    %146 = vmatpush2.xpose.msra.mxu0 0.0
    %147 = vmatprep.subr.mxu0 0.0
    %148 = vmatpush2.xpose.msra.mxu0 0.0
    %149 = vmatprep.subr.mxu0 0.0
    %150 = vmatpush2.xpose.msra.mxu0 0.0
    %151 = vmatprep.subr.mxu0 0.0
    %152 = vmatpush2.xpose.msra.mxu0 0.0
    %153 = vmatprep.subr.mxu0 0.0
    %154 = vmatpush2.xpose.msra.mxu0 0.0
    %155 = vmatprep.subr.mxu0 0.0
    %156 = vmatpush2.xpose.msra.mxu0 0.0
    %157 = vmatprep.subr.mxu0 0.0
    %158 = vmatpush2.xpose.msra.mxu0 0.0
    %159 = vmatprep.subr.mxu0 0.0
    %160 = vmatpush2.xpose.msra.mxu0 0.0
    %161 = vmatprep.subr.mxu0 0.0
    %162 = vmatpush2.xpose.msra.mxu0 0.0
    %163 = vmatprep.subr.mxu0 0.0
    %164 = vmatpush2.xpose.msra.mxu0 0.0
    %165 = vmatprep.mubr.f32.mxu0 0.0
    %166 = vmatmul.mubr.f32.gmra.mxu0 %v93
    %v167 = vpop.f32.mrf.mxu0
    %v168 = vadd.f32 0.0, %v167
    %v169 = vpop.f32.mrf.mxu0
    %170 = vdwg.mxu0
    %vm171 = vcmask 122880
    %172 = vst.msk [vmem:[#allocation5] sm:$0x1] %vm171, %v168
    %v173 = vlaneseq
    %v174 = vshrl.u32 %v173, 7
    %v175 = vsub.s32 0, %v174
    %v176 = vrot.slane %v91, %v175
    %v177 = vmul.f32 %v84, %v176
    %v178 = vmul.f32 %v87, %v176
    %v179 = vsel %vm41, %v177, 0.0
    %180 = vadd.xlane.f32.xlu0 %v179
    %v181 = vpop.xlane.xlu0 %180
    %v182 = vsel %vm41, %v178, 0.0
    %183 = vadd.xlane.f32.xlu0 %v182
    %v184 = vpop.xlane.xlu0 %183
    %vm185 = vcmask 7168
    %186 = vst.msk [vmem:[%s6] sm:$0xff] %vm185, %v181
    %187 = vst.msk [vmem:[%s6 + $0x8] sm:$0xff] %vm185, %v184
    %v188 = vpack.c.bf16 %v87, %v84
    %v190 = vunpack.c.l.b16 %v188
    %v191 = vunpack.c.h.b16 %v188
    %v192 = vpack.c.b16 %v190, %v190
    %v193 = vpack.c.b16 %v191, %v191
    %vm196 = vcmask 60416
    %197 = vst.msk [vmem:[%s4] sm:$0xf] %vm196, %v192
    %198 = vst.msk [vmem:[%s4 + $0x4] sm:$0xf] %vm196, %v193
    %s199 = scalar_lea.vmem [#allocation2], 8
    %v200 = vld [vmem:[%s199] sm:$0xff]
    %v201 = vpack.c.bf16 %v200, %v200
    %v203 = vsel %vm45, %v201, 0
    %205 = vmatprep.subr.bf16.mxu0 0
    %206 = vmatpush1.bf16.msra.mxu0 0
    %207 = vmatprep.subr.bf16.mxu0 0
    %208 = vmatpush1.bf16.msra.mxu0 0
    %209 = vmatprep.subr.bf16.mxu0 0
    %210 = vmatpush1.bf16.msra.mxu0 0
    %211 = vmatprep.subr.bf16.mxu0 0
    %212 = vmatpush1.bf16.msra.mxu0 0
    %213 = vmatprep.subr.bf16.mxu0 0
    %214 = vmatpush1.bf16.msra.mxu0 0
    %215 = vmatprep.subr.bf16.mxu0 0
    %216 = vmatpush1.bf16.msra.mxu0 0
    %217 = vmatprep.subr.bf16.mxu0 0
    %218 = vmatpush1.bf16.msra.mxu0 0
    %219 = vmatprep.subr.bf16.mxu0 0
    %220 = vmatpush1.bf16.msra.mxu0 %v203
    %221 = vmatprep.subr.bf16.mxu0 0
    %222 = vmatpush2.bf16.msra.mxu0 0
    %223 = vmatprep.subr.bf16.mxu0 0
    %224 = vmatpush2.bf16.msra.mxu0 0
    %225 = vmatprep.subr.bf16.mxu0 0
    %226 = vmatpush2.bf16.msra.mxu0 0
    %227 = vmatprep.subr.bf16.mxu0 0
    %228 = vmatpush2.bf16.msra.mxu0 0
    %229 = vmatprep.subr.bf16.mxu0 0
    %230 = vmatpush2.bf16.msra.mxu0 0
    %231 = vmatprep.subr.bf16.mxu0 0
    %232 = vmatpush2.bf16.msra.mxu0 0
    %233 = vmatprep.subr.bf16.mxu0 0
    %234 = vmatpush2.bf16.msra.mxu0 0
    %235 = vmatprep.subr.bf16.mxu0 0
    %236 = vmatpush2.bf16.msra.mxu0 0
    %237 = vmatprep.mubr.bf16.mxu0 0
    %238 = vmatmul.mubr.bf16.gmra.mxu0 %v43
    %v239 = vpop.f32.mrf.mxu0
    %v240 = vadd.f32 0.0, %v239
    %v241 = vpop.f32.mrf.mxu0
    %v242 = vpop.f32.mrf.mxu0
    %v243 = vadd.f32 0.0, %v242
    %v244 = vpop.f32.mrf.mxu0
    %245 = vdwg.mxu0
    %v246 = vld [vmem:[%s2 + $0x1] sm:$0x1]
    %v247 = vld [vmem:[%s3 + $0x1] sm:$0x1]
    %v249 = vsel %vm41, %v246, 0
    %v252 = vsel %vm41, %v240, 0
    %v255 = vsel %vm41, %v243, 0
    %257 = vmatprep.subr.mxu0 0.0
    %258 = vmatpush1.xpose.msra.mxu0 0.0
    %259 = vmatprep.subr.mxu0 0.0
    %260 = vmatpush1.xpose.msra.mxu0 0.0
    %261 = vmatprep.subr.mxu0 0.0
    %262 = vmatpush1.xpose.msra.mxu0 0.0
    %263 = vmatprep.subr.mxu0 0.0
    %264 = vmatpush1.xpose.msra.mxu0 0.0
    %265 = vmatprep.subr.mxu0 0.0
    %266 = vmatpush1.xpose.msra.mxu0 0.0
    %267 = vmatprep.subr.mxu0 0.0
    %268 = vmatpush1.xpose.msra.mxu0 0.0
    %269 = vmatprep.subr.mxu0 0.0
    %270 = vmatpush1.xpose.msra.mxu0 0.0
    %271 = vmatprep.subr.mxu0 0.0
    %272 = vmatpush1.xpose.msra.mxu0 0.0
    %273 = vmatprep.subr.mxu0 0.0
    %274 = vmatpush1.xpose.msra.mxu0 0.0
    %275 = vmatprep.subr.mxu0 0.0
    %276 = vmatpush1.xpose.msra.mxu0 0.0
    %277 = vmatprep.subr.mxu0 0.0
    %278 = vmatpush1.xpose.msra.mxu0 0.0
    %279 = vmatprep.subr.mxu0 0.0
    %280 = vmatpush1.xpose.msra.mxu0 0.0
    %281 = vmatprep.subr.mxu0 0.0
    %282 = vmatpush1.xpose.msra.mxu0 0.0
    %283 = vmatprep.subr.mxu0 0.0
    %284 = vmatpush1.xpose.msra.mxu0 0.0
    %285 = vmatprep.subr.mxu0 0.0
    %286 = vmatpush1.xpose.msra.mxu0 %v255
    %287 = vmatprep.subr.mxu0 0.0
    %288 = vmatpush1.xpose.msra.mxu0 %v252
    %289 = vmatprep.subr.mxu0 0.0
    %290 = vmatpush2.xpose.msra.mxu0 0.0
    %291 = vmatprep.subr.mxu0 0.0
    %292 = vmatpush2.xpose.msra.mxu0 0.0
    %293 = vmatprep.subr.mxu0 0.0
    %294 = vmatpush2.xpose.msra.mxu0 0.0
    %295 = vmatprep.subr.mxu0 0.0
    %296 = vmatpush2.xpose.msra.mxu0 0.0
    %297 = vmatprep.subr.mxu0 0.0
    %298 = vmatpush2.xpose.msra.mxu0 0.0
    %299 = vmatprep.subr.mxu0 0.0
    %300 = vmatpush2.xpose.msra.mxu0 0.0
    %301 = vmatprep.subr.mxu0 0.0
    %302 = vmatpush2.xpose.msra.mxu0 0.0
    %303 = vmatprep.subr.mxu0 0.0
    %304 = vmatpush2.xpose.msra.mxu0 0.0
    %305 = vmatprep.subr.mxu0 0.0
    %306 = vmatpush2.xpose.msra.mxu0 0.0
    %307 = vmatprep.subr.mxu0 0.0
    %308 = vmatpush2.xpose.msra.mxu0 0.0
    %309 = vmatprep.subr.mxu0 0.0
    %310 = vmatpush2.xpose.msra.mxu0 0.0
    %311 = vmatprep.subr.mxu0 0.0
    %312 = vmatpush2.xpose.msra.mxu0 0.0
    %313 = vmatprep.subr.mxu0 0.0
    %314 = vmatpush2.xpose.msra.mxu0 0.0
    %315 = vmatprep.subr.mxu0 0.0
    %316 = vmatpush2.xpose.msra.mxu0 0.0
    %317 = vmatprep.subr.mxu0 0.0
    %318 = vmatpush2.xpose.msra.mxu0 0.0
    %319 = vmatprep.subr.mxu0 0.0
    %320 = vmatpush2.xpose.msra.mxu0 0.0
    %321 = vmatprep.mubr.f32.mxu0 0.0
    %322 = vmatmul.mubr.f32.gmra.mxu0 %v249
    %v323 = vpop.f32.mrf.mxu0
    %v324 = vadd.f32 0.0, %v323
    %v325 = vpop.f32.mrf.mxu0
    %326 = vdwg.mxu0
    %s327 = scalar_lea.vmem [#allocation5], 1
    %328 = vst.msk [vmem:[%s327] sm:$0x1] %vm171, %v324
    %v329 = vlaneseq
    %v330 = vshrl.u32 %v329, 7
    %v331 = vsub.s32 0, %v330
    %v332 = vrot.slane %v247, %v331
    %v333 = vmul.f32 %v240, %v332
    %v334 = vmul.f32 %v243, %v332
    %v335 = vsel %vm41, %v333, 0.0
    %336 = vadd.xlane.f32.xlu0 %v335
    %v337 = vpop.xlane.xlu0 %336
    %v338 = vsel %vm41, %v334, 0.0
    %339 = vadd.xlane.f32.xlu0 %v338
    %v340 = vpop.xlane.xlu0 %339
    %s341 = scalar_lea.vmem %s6, 16
    %342 = vst.msk [vmem:[%s341] sm:$0xff] %vm185, %v337
    %343 = vst.msk [vmem:[%s341 + $0x8] sm:$0xff] %vm185, %v340
    %v344 = vpack.c.bf16 %v243, %v240
    %v346 = vunpack.c.l.b16 %v344
    %v347 = vunpack.c.h.b16 %v344
    %v348 = vpack.c.b16 %v346, %v346
    %v349 = vpack.c.b16 %v347, %v347
    %s352 = scalar_lea.vmem %s4, 8
    %353 = vst.msk [vmem:[%s352] sm:$0xf] %vm196, %v348
    %354 = vst.msk [vmem:[%s352 + $0x4] sm:$0xf] %vm196, %v349
    %s355 = scalar_lea.vmem [#allocation2], 16
    %v356 = vld [vmem:[%s355] sm:$0xff]
    %v357 = vpack.c.bf16 %v356, %v356
    %v359 = vsel %vm45, %v357, 0
    %361 = vmatprep.subr.bf16.mxu0 0
    %362 = vmatpush1.bf16.msra.mxu0 0
    %363 = vmatprep.subr.bf16.mxu0 0
    %364 = vmatpush1.bf16.msra.mxu0 0
    %365 = vmatprep.subr.bf16.mxu0 0
    %366 = vmatpush1.bf16.msra.mxu0 0
    %367 = vmatprep.subr.bf16.mxu0 0
    %368 = vmatpush1.bf16.msra.mxu0 0
    %369 = vmatprep.subr.bf16.mxu0 0
    %370 = vmatpush1.bf16.msra.mxu0 0
    %371 = vmatprep.subr.bf16.mxu0 0
    %372 = vmatpush1.bf16.msra.mxu0 0
    %373 = vmatprep.subr.bf16.mxu0 0
    %374 = vmatpush1.bf16.msra.mxu0 0
    %375 = vmatprep.subr.bf16.mxu0 0
    %376 = vmatpush1.bf16.msra.mxu0 %v359
    %377 = vmatprep.subr.bf16.mxu0 0
    %378 = vmatpush2.bf16.msra.mxu0 0
    %379 = vmatprep.subr.bf16.mxu0 0
    %380 = vmatpush2.bf16.msra.mxu0 0
    %381 = vmatprep.subr.bf16.mxu0 0
    %382 = vmatpush2.bf16.msra.mxu0 0
    %383 = vmatprep.subr.bf16.mxu0 0
    %384 = vmatpush2.bf16.msra.mxu0 0
    %385 = vmatprep.subr.bf16.mxu0 0
    %386 = vmatpush2.bf16.msra.mxu0 0
    %387 = vmatprep.subr.bf16.mxu0 0
    %388 = vmatpush2.bf16.msra.mxu0 0
    %389 = vmatprep.subr.bf16.mxu0 0
    %390 = vmatpush2.bf16.msra.mxu0 0
    %391 = vmatprep.subr.bf16.mxu0 0
    %392 = vmatpush2.bf16.msra.mxu0 0
    %393 = vmatprep.mubr.bf16.mxu0 0
    %394 = vmatmul.mubr.bf16.gmra.mxu0 %v43
    %v395 = vpop.f32.mrf.mxu0
    %v396 = vadd.f32 0.0, %v395
    %v397 = vpop.f32.mrf.mxu0
    %v398 = vpop.f32.mrf.mxu0
    %v399 = vadd.f32 0.0, %v398
    %v400 = vpop.f32.mrf.mxu0
    %401 = vdwg.mxu0
    %v402 = vld [vmem:[%s2 + $0x2] sm:$0x1]
    %v403 = vld [vmem:[%s3 + $0x2] sm:$0x1]
    %v405 = vsel %vm41, %v402, 0
    %v408 = vsel %vm41, %v396, 0
    %v411 = vsel %vm41, %v399, 0
    %413 = vmatprep.subr.mxu0 0.0
    %414 = vmatpush1.xpose.msra.mxu0 0.0
    %415 = vmatprep.subr.mxu0 0.0
    %416 = vmatpush1.xpose.msra.mxu0 0.0
    %417 = vmatprep.subr.mxu0 0.0
    %418 = vmatpush1.xpose.msra.mxu0 0.0
    %419 = vmatprep.subr.mxu0 0.0
    %420 = vmatpush1.xpose.msra.mxu0 0.0
    %421 = vmatprep.subr.mxu0 0.0
    %422 = vmatpush1.xpose.msra.mxu0 0.0
    %423 = vmatprep.subr.mxu0 0.0
    %424 = vmatpush1.xpose.msra.mxu0 0.0
    %425 = vmatprep.subr.mxu0 0.0
    %426 = vmatpush1.xpose.msra.mxu0 0.0
    %427 = vmatprep.subr.mxu0 0.0
    %428 = vmatpush1.xpose.msra.mxu0 0.0
    %429 = vmatprep.subr.mxu0 0.0
    %430 = vmatpush1.xpose.msra.mxu0 0.0
    %431 = vmatprep.subr.mxu0 0.0
    %432 = vmatpush1.xpose.msra.mxu0 0.0
    %433 = vmatprep.subr.mxu0 0.0
    %434 = vmatpush1.xpose.msra.mxu0 0.0
    %435 = vmatprep.subr.mxu0 0.0
    %436 = vmatpush1.xpose.msra.mxu0 0.0
    %437 = vmatprep.subr.mxu0 0.0
    %438 = vmatpush1.xpose.msra.mxu0 0.0
    %439 = vmatprep.subr.mxu0 0.0
    %440 = vmatpush1.xpose.msra.mxu0 0.0
    %441 = vmatprep.subr.mxu0 0.0
    %442 = vmatpush1.xpose.msra.mxu0 %v411
    %443 = vmatprep.subr.mxu0 0.0
    %444 = vmatpush1.xpose.msra.mxu0 %v408
    %445 = vmatprep.subr.mxu0 0.0
    %446 = vmatpush2.xpose.msra.mxu0 0.0
    %447 = vmatprep.subr.mxu0 0.0
    %448 = vmatpush2.xpose.msra.mxu0 0.0
    %449 = vmatprep.subr.mxu0 0.0
    %450 = vmatpush2.xpose.msra.mxu0 0.0
    %451 = vmatprep.subr.mxu0 0.0
    %452 = vmatpush2.xpose.msra.mxu0 0.0
    %453 = vmatprep.subr.mxu0 0.0
    %454 = vmatpush2.xpose.msra.mxu0 0.0
    %455 = vmatprep.subr.mxu0 0.0
    %456 = vmatpush2.xpose.msra.mxu0 0.0
    %457 = vmatprep.subr.mxu0 0.0
    %458 = vmatpush2.xpose.msra.mxu0 0.0
    %459 = vmatprep.subr.mxu0 0.0
    %460 = vmatpush2.xpose.msra.mxu0 0.0
    %461 = vmatprep.subr.mxu0 0.0
    %462 = vmatpush2.xpose.msra.mxu0 0.0
    %463 = vmatprep.subr.mxu0 0.0
    %464 = vmatpush2.xpose.msra.mxu0 0.0
    %465 = vmatprep.subr.mxu0 0.0
    %466 = vmatpush2.xpose.msra.mxu0 0.0
    %467 = vmatprep.subr.mxu0 0.0
    %468 = vmatpush2.xpose.msra.mxu0 0.0
    %469 = vmatprep.subr.mxu0 0.0
    %470 = vmatpush2.xpose.msra.mxu0 0.0
    %471 = vmatprep.subr.mxu0 0.0
    %472 = vmatpush2.xpose.msra.mxu0 0.0
    %473 = vmatprep.subr.mxu0 0.0
    %474 = vmatpush2.xpose.msra.mxu0 0.0
    %475 = vmatprep.subr.mxu0 0.0
    %476 = vmatpush2.xpose.msra.mxu0 0.0
    %477 = vmatprep.mubr.f32.mxu0 0.0
    %478 = vmatmul.mubr.f32.gmra.mxu0 %v405
    %v479 = vpop.f32.mrf.mxu0
    %v480 = vadd.f32 0.0, %v479
    %v481 = vpop.f32.mrf.mxu0
    %482 = vdwg.mxu0
    %s483 = scalar_lea.vmem [#allocation5], 2
    %484 = vst.msk [vmem:[%s483] sm:$0x1] %vm171, %v480
    %v485 = vlaneseq
    %v486 = vshrl.u32 %v485, 7
    %v487 = vsub.s32 0, %v486
    %v488 = vrot.slane %v403, %v487
    %v489 = vmul.f32 %v396, %v488
    %v490 = vmul.f32 %v399, %v488
    %v491 = vsel %vm41, %v489, 0.0
    %492 = vadd.xlane.f32.xlu0 %v491
    %v493 = vpop.xlane.xlu0 %492
    %v494 = vsel %vm41, %v490, 0.0
    %495 = vadd.xlane.f32.xlu0 %v494
    %v496 = vpop.xlane.xlu0 %495
    %s497 = scalar_lea.vmem %s6, 32
    %498 = vst.msk [vmem:[%s497] sm:$0xff] %vm185, %v493
    %499 = vst.msk [vmem:[%s497 + $0x8] sm:$0xff] %vm185, %v496
    %v500 = vpack.c.bf16 %v399, %v396
    %v502 = vunpack.c.l.b16 %v500
    %v503 = vunpack.c.h.b16 %v500
    %v504 = vpack.c.b16 %v502, %v502
    %v505 = vpack.c.b16 %v503, %v503
    %s508 = scalar_lea.vmem %s4, 16
    %509 = vst.msk [vmem:[%s508] sm:$0xf] %vm196, %v504
    %510 = vst.msk [vmem:[%s508 + $0x4] sm:$0xf] %vm196, %v505
    %s511 = scalar_lea.vmem [#allocation2], 24
    %v512 = vld [vmem:[%s511] sm:$0xff]
    %v513 = vpack.c.bf16 %v512, %v512
    %v515 = vsel %vm45, %v513, 0
    %517 = vmatprep.subr.bf16.mxu0 0
    %518 = vmatpush1.bf16.msra.mxu0 0
    %519 = vmatprep.subr.bf16.mxu0 0
    %520 = vmatpush1.bf16.msra.mxu0 0
    %521 = vmatprep.subr.bf16.mxu0 0
    %522 = vmatpush1.bf16.msra.mxu0 0
    %523 = vmatprep.subr.bf16.mxu0 0
    %524 = vmatpush1.bf16.msra.mxu0 0
    %525 = vmatprep.subr.bf16.mxu0 0
    %526 = vmatpush1.bf16.msra.mxu0 0
    %527 = vmatprep.subr.bf16.mxu0 0
    %528 = vmatpush1.bf16.msra.mxu0 0
    %529 = vmatprep.subr.bf16.mxu0 0
    %530 = vmatpush1.bf16.msra.mxu0 0
    %531 = vmatprep.subr.bf16.mxu0 0
    %532 = vmatpush1.bf16.msra.mxu0 %v515
    %533 = vmatprep.subr.bf16.mxu0 0
    %534 = vmatpush2.bf16.msra.mxu0 0
    %535 = vmatprep.subr.bf16.mxu0 0
    %536 = vmatpush2.bf16.msra.mxu0 0
    %537 = vmatprep.subr.bf16.mxu0 0
    %538 = vmatpush2.bf16.msra.mxu0 0
    %539 = vmatprep.subr.bf16.mxu0 0
    %540 = vmatpush2.bf16.msra.mxu0 0
    %541 = vmatprep.subr.bf16.mxu0 0
    %542 = vmatpush2.bf16.msra.mxu0 0
    %543 = vmatprep.subr.bf16.mxu0 0
    %544 = vmatpush2.bf16.msra.mxu0 0
    %545 = vmatprep.subr.bf16.mxu0 0
    %546 = vmatpush2.bf16.msra.mxu0 0
    %547 = vmatprep.subr.bf16.mxu0 0
    %548 = vmatpush2.bf16.msra.mxu0 0
    %549 = vmatprep.mubr.bf16.mxu0 0
    %550 = vmatmul.mubr.bf16.gmra.mxu0 %v43
    %v551 = vpop.f32.mrf.mxu0
    %v552 = vadd.f32 0.0, %v551
    %v553 = vpop.f32.mrf.mxu0
    %v554 = vpop.f32.mrf.mxu0
    %v555 = vadd.f32 0.0, %v554
    %v556 = vpop.f32.mrf.mxu0
    %557 = vdwg.mxu0
    %v558 = vld [vmem:[%s2 + $0x3] sm:$0x1]
    %v559 = vld [vmem:[%s3 + $0x3] sm:$0x1]
    %v561 = vsel %vm41, %v558, 0
    %v564 = vsel %vm41, %v552, 0
    %v567 = vsel %vm41, %v555, 0
    %569 = vmatprep.subr.mxu0 0.0
    %570 = vmatpush1.xpose.msra.mxu0 0.0
    %571 = vmatprep.subr.mxu0 0.0
    %572 = vmatpush1.xpose.msra.mxu0 0.0
    %573 = vmatprep.subr.mxu0 0.0
    %574 = vmatpush1.xpose.msra.mxu0 0.0
    %575 = vmatprep.subr.mxu0 0.0
    %576 = vmatpush1.xpose.msra.mxu0 0.0
    %577 = vmatprep.subr.mxu0 0.0
    %578 = vmatpush1.xpose.msra.mxu0 0.0
    %579 = vmatprep.subr.mxu0 0.0
    %580 = vmatpush1.xpose.msra.mxu0 0.0
    %581 = vmatprep.subr.mxu0 0.0
    %582 = vmatpush1.xpose.msra.mxu0 0.0
    %583 = vmatprep.subr.mxu0 0.0
    %584 = vmatpush1.xpose.msra.mxu0 0.0
    %585 = vmatprep.subr.mxu0 0.0
    %586 = vmatpush1.xpose.msra.mxu0 0.0
    %587 = vmatprep.subr.mxu0 0.0
    %588 = vmatpush1.xpose.msra.mxu0 0.0
    %589 = vmatprep.subr.mxu0 0.0
    %590 = vmatpush1.xpose.msra.mxu0 0.0
    %591 = vmatprep.subr.mxu0 0.0
    %592 = vmatpush1.xpose.msra.mxu0 0.0
    %593 = vmatprep.subr.mxu0 0.0
    %594 = vmatpush1.xpose.msra.mxu0 0.0
    %595 = vmatprep.subr.mxu0 0.0
    %596 = vmatpush1.xpose.msra.mxu0 0.0
    %597 = vmatprep.subr.mxu0 0.0
    %598 = vmatpush1.xpose.msra.mxu0 %v567
    %599 = vmatprep.subr.mxu0 0.0
    %600 = vmatpush1.xpose.msra.mxu0 %v564
    %601 = vmatprep.subr.mxu0 0.0
    %602 = vmatpush2.xpose.msra.mxu0 0.0
    %603 = vmatprep.subr.mxu0 0.0
    %604 = vmatpush2.xpose.msra.mxu0 0.0
    %605 = vmatprep.subr.mxu0 0.0
    %606 = vmatpush2.xpose.msra.mxu0 0.0
    %607 = vmatprep.subr.mxu0 0.0
    %608 = vmatpush2.xpose.msra.mxu0 0.0
    %609 = vmatprep.subr.mxu0 0.0
    %610 = vmatpush2.xpose.msra.mxu0 0.0
    %611 = vmatprep.subr.mxu0 0.0
    %612 = vmatpush2.xpose.msra.mxu0 0.0
    %613 = vmatprep.subr.mxu0 0.0
    %614 = vmatpush2.xpose.msra.mxu0 0.0
    %615 = vmatprep.subr.mxu0 0.0
    %616 = vmatpush2.xpose.msra.mxu0 0.0
    %617 = vmatprep.subr.mxu0 0.0
    %618 = vmatpush2.xpose.msra.mxu0 0.0
    %619 = vmatprep.subr.mxu0 0.0
    %620 = vmatpush2.xpose.msra.mxu0 0.0
    %621 = vmatprep.subr.mxu0 0.0
    %622 = vmatpush2.xpose.msra.mxu0 0.0
    %623 = vmatprep.subr.mxu0 0.0
    %624 = vmatpush2.xpose.msra.mxu0 0.0
    %625 = vmatprep.subr.mxu0 0.0
    %626 = vmatpush2.xpose.msra.mxu0 0.0
    %627 = vmatprep.subr.mxu0 0.0
    %628 = vmatpush2.xpose.msra.mxu0 0.0
    %629 = vmatprep.subr.mxu0 0.0
    %630 = vmatpush2.xpose.msra.mxu0 0.0
    %631 = vmatprep.subr.mxu0 0.0
    %632 = vmatpush2.xpose.msra.mxu0 0.0
    %633 = vmatprep.mubr.f32.mxu0 0.0
    %634 = vmatmul.mubr.f32.gmra.mxu0 %v561
    %v635 = vpop.f32.mrf.mxu0
    %v636 = vadd.f32 0.0, %v635
    %v637 = vpop.f32.mrf.mxu0
    %638 = vdwg.mxu0
    %s639 = scalar_lea.vmem [#allocation5], 3
    %640 = vst.msk [vmem:[%s639] sm:$0x1] %vm171, %v636
    %v641 = vlaneseq
    %v642 = vshrl.u32 %v641, 7
    %v643 = vsub.s32 0, %v642
    %v644 = vrot.slane %v559, %v643
    %v645 = vmul.f32 %v552, %v644
    %v646 = vmul.f32 %v555, %v644
    %v647 = vsel %vm41, %v645, 0.0
    %648 = vadd.xlane.f32.xlu0 %v647
    %v649 = vpop.xlane.xlu0 %648
    %v650 = vsel %vm41, %v646, 0.0
    %651 = vadd.xlane.f32.xlu0 %v650
    %v652 = vpop.xlane.xlu0 %651
    %s653 = scalar_lea.vmem %s6, 48
    %654 = vst.msk [vmem:[%s653] sm:$0xff] %vm185, %v649
    %655 = vst.msk [vmem:[%s653 + $0x8] sm:$0xff] %vm185, %v652
    %v656 = vpack.c.bf16 %v555, %v552
    %v658 = vunpack.c.l.b16 %v656
    %v659 = vunpack.c.h.b16 %v656
    %v660 = vpack.c.b16 %v658, %v658
    %v661 = vpack.c.b16 %v659, %v659
    %s664 = scalar_lea.vmem %s4, 24
    %665 = vst.msk [vmem:[%s664] sm:$0xf] %vm196, %v660
    %666 = vst.msk [vmem:[%s664 + $0x4] sm:$0xf] %vm196, %v661
    // Predicated region
    $region22: #{tpu_custom_call.1} parent=1 // pred_check
      _
    $region23: #{tpu_custom_call.1} parent=1 // pred_check_branch
      %668 = sbr.rel (0) target = $region25
    $region24: #{tpu_custom_call.1} parent=1 // pred_region
      _
    $region25: #{tpu_custom_call.1} parent=1 // pred_fallthru
      _
    // Predicated region
    $region26: #{tpu_custom_call.1} parent=1 // pred_check
      _
    $region27: #{tpu_custom_call.1} parent=1 // pred_check_branch
      %670 = sbr.rel (0) target = $region29
    $region28: #{tpu_custom_call.1} parent=1 // pred_region
      %s672 = ssub.s32 64, 64
      %673 = vsyncadd [#allocation4], %s672
      %s674 = sshll.u32 [#allocation5], 4
      %s675 = int_to_ptr.vmem [resolvable:$true] %s674
      %680 = dma.vmem_to_hbm [thread:$0]  %s675, 64, %s5, [#allocation4], 16, 16, 1
    $region29: #{tpu_custom_call.1} parent=1 // pred_fallthru
      _
    // Predicated region
    $region30: #{tpu_custom_call.1} parent=1 // pred_check
      _
    $region31: #{tpu_custom_call.1} parent=1 // pred_check_branch
      %682 = sbr.rel (0) target = $region33
    $region32: #{tpu_custom_call.1} parent=1 // pred_region
      _
    $region33: #{tpu_custom_call.1} parent=1 // pred_fallthru
      _
    // Predicated region
    $region34: #{tpu_custom_call.1} parent=1 // pred_check
      _
    $region35: #{tpu_custom_call.1} parent=1 // pred_check_branch
      %684 = sbr.rel (0) target = $region37
    $region36: #{tpu_custom_call.1} parent=1 // pred_region
      _
    $region37: #{tpu_custom_call.1} parent=1 // pred_fallthru
      _
    // Predicated region
    $region38: #{tpu_custom_call.1} parent=1 // pred_check
      _
    $region39: #{tpu_custom_call.1} parent=1 // pred_check_branch
      %686 = sbr.rel (0) target = $region41
    $region40: #{tpu_custom_call.1} parent=1 // pred_region
      %687 = dma.done [#allocation4], 64
    $region41: #{tpu_custom_call.1} parent=1 // pred_fallthru
      _
    // Predicated region
    $region42: #{tpu_custom_call.1} parent=1 // pred_check
      _
    $region43: #{tpu_custom_call.1} parent=1 // pred_check_branch
      %689 = sbr.rel (0) target = $region45
    $region44: #{tpu_custom_call.1} parent=1 // pred_region
      _
    $region45: #{tpu_custom_call.1} parent=1 // pred_fallthru
      _
    %690 = vsyncpa [#allocation3], 1
    %691 = vsyncpa [#allocation4], 1

</llo_original>
